<compile_context>
chip_gen: v7x
topology: tpu7x:2x2x1
jax: 0.10.0
libtpu: 0.0.40
codegen_flags: <defaults>
</compile_context>

<pallas_src>
import functools

import numpy as np
import jax
import jax.numpy as jnp
from jax.experimental import pallas as pl
from jax.experimental.pallas import tpu as pltpu

HIDDEN = 64          # per-head hidden width (matches the PyTorch module)
FUSED = 2 * HIDDEN   # 128 = actor 64 lanes + critic 64 lanes
FUSED_OUT = 128      # lane-dense output slab width (OUT_LANES)
OUT_LANES = FUSED_OUT


def _round_up(x, m):
    return -(-x // m) * m


def actor_critic_kernel(x_ref, w1_ref, w2_ref, w3_ref, b_ref, out_ref, *, action_dim):
    cdt = w1_ref.dtype                     # MXU input dtype (f32 or bf16)
    x = x_ref[...].astype(cdt)

    # layer 1: shared input -> [TB, 128] fused hidden (actor lanes 0:64, critic 64:128)
    h = jnp.tanh(
        jnp.dot(x, w1_ref[...], preferred_element_type=jnp.float32) + b_ref[0:1, :]
    )
    # layer 2: block-diagonal fused weight keeps the two heads independent
    h = jnp.tanh(
        jnp.dot(h.astype(cdt), w2_ref[...], preferred_element_type=jnp.float32)
        + b_ref[1:2, :]
    )
    # layer 3: lanes 0:action_dim = actor pre-activation, lane action_dim = critic value
    z = (jnp.dot(h.astype(cdt), w3_ref[...], preferred_element_type=jnp.float32)
         + b_ref[2:3, :])

    # tanh only on actor lanes; value lane (and padding) stays linear.
    # (1, 128) lane-index row broadcast against the tile -> no [TB,128] int32 temp.
    lane = jax.lax.broadcasted_iota(jnp.int32, (1, OUT_LANES), dimension=1)
    out_ref[...] = jnp.where(lane < action_dim, jnp.tanh(z), z).astype(out_ref.dtype)


def pack_params(p, action_dim, *, param_dtype=jnp.float32):
    """Fuse the 12 per-layer tensors into 4 kernel operands (done once on host)."""
    assert action_dim + 1 <= OUT_LANES, (
        f"action_dim + 1 must fit in the {OUT_LANES}-lane output slab")
    H = HIDDEN
    w1 = jnp.concatenate([p["wa1"], p["wc1"]], axis=1)                    # [S, 128]
    b1 = jnp.concatenate([p["ba1"], p["bc1"]], axis=1)                    # [1, 128]

    w2 = jnp.zeros((FUSED, FUSED), jnp.float32)
    w2 = w2.at[:H, :H].set(p["wa2"]).at[H:, H:].set(p["wc2"])             # [128, 128]
    b2 = jnp.concatenate([p["ba2"], p["bc2"]], axis=1)                    # [1, 128]

    w3 = jnp.zeros((FUSED, OUT_LANES), jnp.float32)
    w3 = w3.at[:H, :action_dim].set(p["wa3"])
    w3 = w3.at[H:, action_dim:action_dim + 1].set(p["wc3"])               # [128, 128]
    b3 = jnp.zeros((1, OUT_LANES), jnp.float32)
    b3 = b3.at[:, :action_dim].set(p["ba3"])
    b3 = b3.at[:, action_dim:action_dim + 1].set(p["bc3"])                # [1, 128]

    bias = jnp.concatenate([b1, b2, b3], axis=0)                          # [3, 128] f32
    return dict(
        w1=w1.astype(param_dtype),
        w2=w2.astype(param_dtype),
        w3=w3.astype(param_dtype),
        bias=bias,                       # bias stays f32 (added to the f32 accumulator)
        action_dim=int(action_dim),
    )


def actor_critic_forward(state, packed, *, block_b=4096, out_dtype=jnp.float32):
    """state: [B, state_dim] f32. packed: output of pack_params. Returns (mean, value)."""
    B, S = state.shape
    action_dim = packed["action_dim"]

    # Batch tile selection:
    #   * largest tile up to block_b (per-grid-step overhead ~0.35 us, so big tiles win)
    #   * but guarantee >= 2 grid steps whenever B > 8 so the "parallel" batch axis can
    #     split across the two TensorCores on v7x (megacore)
    #   * TB is always a multiple of 8 (sublane); ragged last block is masked by Pallas.
    if B <= 8:
        TB = 8
    else:
        TB = max(8, min(block_b, _round_up(pl.cdiv(B, 2), 8)))
    grid_b = pl.cdiv(B, TB)

    kernel = functools.partial(actor_critic_kernel, action_dim=action_dim)

    x_bytes = state.dtype.itemsize
    w_bytes = np.dtype(packed["w1"].dtype).itemsize
    o_bytes = np.dtype(out_dtype).itemsize
    flops = 2 * B * (S * FUSED + FUSED * FUSED + FUSED * OUT_LANES)
    bytes_accessed = (
        B * S * x_bytes
        + (S * FUSED + FUSED * FUSED + FUSED * OUT_LANES) * w_bytes
        + 3 * OUT_LANES * 4
        + B * OUT_LANES * o_bytes)

    out = pl.pallas_call(
        kernel,
        out_shape=jax.ShapeDtypeStruct((B, OUT_LANES), out_dtype),
        grid_spec=pltpu.PrefetchScalarGridSpec(
            num_scalar_prefetch=0,
            grid=(grid_b,),
            in_specs=[
                pl.BlockSpec((TB, S), lambda i: (i, 0)),             # batch tile of x
                pl.BlockSpec((S, FUSED), lambda i: (0, 0)),          # W1 (VMEM-resident)
                pl.BlockSpec((FUSED, FUSED), lambda i: (0, 0)),      # W2 (VMEM-resident)
                pl.BlockSpec((FUSED, OUT_LANES), lambda i: (0, 0)),  # W3 (VMEM-resident)
                pl.BlockSpec((3, OUT_LANES), lambda i: (0, 0)),      # bias stack
            ],
            out_specs=pl.BlockSpec((TB, OUT_LANES), lambda i: (i, 0)),
        ),
        compiler_params=pltpu.CompilerParams(
            dimension_semantics=("parallel",),
            vmem_limit_bytes=32 * 1024 * 1024,
        ),
        cost_estimate=pl.CostEstimate(
            flops=flops,
            transcendentals=B * 3 * OUT_LANES,   # tanh on all 128 lanes in each layer
            bytes_accessed=bytes_accessed,
        ),
    )(state, packed["w1"], packed["w2"], packed["w3"], packed["bias"])

    action_mean = out[:, :action_dim]
    state_value = out[:, action_dim:action_dim + 1]
    return action_mean, state_value


def _linear_init(key, fan_in, fan_out):
    """Deterministic analogue of PyTorch nn.Linear default init: U(-1/sqrt(fan_in), +)."""
    kw, kb = jax.random.split(key)
    bound = 1.0 / (fan_in ** 0.5)
    w = jax.random.uniform(kw, (fan_in, fan_out), jnp.float32, -bound, bound)
    b = jax.random.uniform(kb, (1, fan_out), jnp.float32, -bound, bound)
    return w, b


def init_params(key, state_dim, action_dim, hidden=HIDDEN):
    keys = jax.random.split(key, 6)
    wa1, ba1 = _linear_init(keys[0], state_dim, hidden)
    wa2, ba2 = _linear_init(keys[1], hidden, hidden)
    wa3, ba3 = _linear_init(keys[2], hidden, action_dim)
    wc1, bc1 = _linear_init(keys[3], state_dim, hidden)
    wc2, bc2 = _linear_init(keys[4], hidden, hidden)
    wc3, bc3 = _linear_init(keys[5], hidden, 1)
    # log_std parameter exists in the module but is unused by forward().
    log_std = jnp.zeros((action_dim,), jnp.float32)
    return dict(
        wa1=wa1, ba1=ba1, wa2=wa2, ba2=ba2, wa3=wa3, ba3=ba3,
        wc1=wc1, bc1=bc1, wc2=wc2, bc2=bc2, wc3=wc3, bc3=bc3,
        log_std=log_std,
    )


def _reference_forward(state, p):
    h = jnp.tanh(state @ p["wa1"] + p["ba1"])
    h = jnp.tanh(h @ p["wa2"] + p["ba2"])
    mean = jnp.tanh(h @ p["wa3"] + p["ba3"])
    g = jnp.tanh(state @ p["wc1"] + p["bc1"])
    g = jnp.tanh(g @ p["wc2"] + p["bc2"])
    val = g @ p["wc3"] + p["bc3"]
    return mean, val


if __name__ == "__main__":
    key = jax.random.PRNGKey(0)
    k_params, k_state = jax.random.split(key)

    batch = 8
    state_dim = 16
    action_dim = 4

    params = init_params(k_params, state_dim, action_dim)
    packed = pack_params(params, action_dim)           # f32 path for the 1e-5 check
    state = jax.random.normal(k_state, (batch, state_dim), jnp.float32)

    action_mean, state_value = actor_critic_forward(state, packed)
    jax.block_until_ready((action_mean, state_value))

    # sanity-check against plain-JAX reference of the un-fused network
    ref_mean, ref_val = _reference_forward(state, params)
    assert action_mean.shape == (batch, action_dim)
    assert state_value.shape == (batch, 1)
    assert jnp.allclose(action_mean, ref_mean, atol=1e-5)
    assert jnp.allclose(state_value, ref_val, atol=1e-5)

    # Exercise the ragged-last-block path (no host pad) on a batch that is not a
    # multiple of the tile, with >= 2 grid steps.
    big_b = 1000
    big_state = jax.random.normal(jax.random.PRNGKey(1), (big_b, state_dim), jnp.float32)
    bm, bv = actor_critic_forward(big_state, packed)
    jax.block_until_ready((bm, bv))
    rm, rv = _reference_forward(big_state, params)
    assert bm.shape == (big_b, action_dim) and bv.shape == (big_b, 1)
    assert jnp.allclose(bm, rm, atol=1e-5)
    assert jnp.allclose(bv, rv, atol=1e-5)

    # TODO(synk): act()/evaluate() involve MultivariateNormal sampling/log_prob/entropy,
    # which are outside the forward() hot path and left to host-side JAX if needed.
    print("KERNEL_OK")
</pallas_src>

<mosaic_0001>
module attributes {stable_mosaic.version = 11 : i64} {
  func.func @actor_critic_kernel(%arg0: i32, %arg1: memref<8x16xf32, #tpu.memory_space<vmem>>, %arg2: memref<16x128xf32, #tpu.memory_space<vmem>>, %arg3: memref<128x128xf32, #tpu.memory_space<vmem>>, %arg4: memref<128x128xf32, #tpu.memory_space<vmem>>, %arg5: memref<3x128xf32, #tpu.memory_space<vmem>>, %arg6: memref<8x128xf32, #tpu.memory_space<vmem>>) attributes {dimension_semantics = [#tpu.dimension_semantics<parallel>], iteration_bounds = array<i64: 1>, scalar_prefetch = 0 : i64, scratch_operands = 0 : i64, tpu.core_type = #tpu.core_type<tc>, window_params = [{transform_indices = @transform_0, window_bounds = array<i64: 8, 16>}, {pipeline_mode = #tpu.pipeline_mode<synchronous>, transform_indices = @transform_1, window_bounds = array<i64: 16, 128>}, {pipeline_mode = #tpu.pipeline_mode<synchronous>, transform_indices = @transform_2, window_bounds = array<i64: 128, 128>}, {pipeline_mode = #tpu.pipeline_mode<synchronous>, transform_indices = @transform_3, window_bounds = array<i64: 128, 128>}, {pipeline_mode = #tpu.pipeline_mode<synchronous>, transform_indices = @transform_4, window_bounds = array<i64: 3, 128>}, {transform_indices = @transform_5, window_bounds = array<i64: 8, 128>}]} {
    %c0 = arith.constant 0 : index
    %c0_0 = arith.constant 0 : index
    %0 = vector.load %arg1[%c0, %c0_0] : memref<8x16xf32, #tpu.memory_space<vmem>>, vector<8x16xf32>
    %c0_1 = arith.constant 0 : index
    %c0_2 = arith.constant 0 : index
    %1 = vector.load %arg2[%c0_1, %c0_2] : memref<16x128xf32, #tpu.memory_space<vmem>>, vector<16x128xf32>
    %cst = arith.constant dense<0.000000e+00> : vector<8x128xf32>
    %2 = tpu.matmul %0, %1, %cst {dimension_numbers = #tpu.dot_dimension_numbers<[1], [0], [0], [1], [0, 0, 1, 1], [], []>} : vector<8x16xf32>, vector<16x128xf32>, vector<8x128xf32> -> vector<8x128xf32>
    %c0_3 = arith.constant 0 : index
    %c0_4 = arith.constant 0 : index
    %3 = vector.load %arg5[%c0_3, %c0_4] : memref<3x128xf32, #tpu.memory_space<vmem>>, vector<1x128xf32>
    %4 = vector.broadcast %3 : vector<1x128xf32> to vector<8x128xf32>
    %5 = arith.addf %2, %4 : vector<8x128xf32>
    %6 = math.tanh %5 : vector<8x128xf32>
    %c0_5 = arith.constant 0 : index
    %c0_6 = arith.constant 0 : index
    %7 = vector.load %arg3[%c0_5, %c0_6] : memref<128x128xf32, #tpu.memory_space<vmem>>, vector<128x128xf32>
    %cst_7 = arith.constant dense<0.000000e+00> : vector<8x128xf32>
    %8 = tpu.matmul %6, %7, %cst_7 {dimension_numbers = #tpu.dot_dimension_numbers<[1], [0], [0], [1], [0, 0, 1, 1], [], []>} : vector<8x128xf32>, vector<128x128xf32>, vector<8x128xf32> -> vector<8x128xf32>
    %c1 = arith.constant 1 : index
    %c0_8 = arith.constant 0 : index
    %9 = vector.load %arg5[%c1, %c0_8] : memref<3x128xf32, #tpu.memory_space<vmem>>, vector<1x128xf32>
    %10 = vector.broadcast %9 : vector<1x128xf32> to vector<8x128xf32>
    %11 = arith.addf %8, %10 : vector<8x128xf32>
    %12 = math.tanh %11 : vector<8x128xf32>
    %c0_9 = arith.constant 0 : index
    %c0_10 = arith.constant 0 : index
    %13 = vector.load %arg4[%c0_9, %c0_10] : memref<128x128xf32, #tpu.memory_space<vmem>>, vector<128x128xf32>
    %cst_11 = arith.constant dense<0.000000e+00> : vector<8x128xf32>
    %14 = tpu.matmul %12, %13, %cst_11 {dimension_numbers = #tpu.dot_dimension_numbers<[1], [0], [0], [1], [0, 0, 1, 1], [], []>} : vector<8x128xf32>, vector<128x128xf32>, vector<8x128xf32> -> vector<8x128xf32>
    %c2 = arith.constant 2 : index
    %c0_12 = arith.constant 0 : index
    %15 = vector.load %arg5[%c2, %c0_12] : memref<3x128xf32, #tpu.memory_space<vmem>>, vector<1x128xf32>
    %16 = vector.broadcast %15 : vector<1x128xf32> to vector<8x128xf32>
    %17 = arith.addf %14, %16 : vector<8x128xf32>
    %18 = tpu.iota {dimensions = array<i32: 1>} : vector<1x128xi32>
    %c4_i32 = arith.constant 4 : i32
    %19 = vector.broadcast %c4_i32 : i32 to vector<1x128xi32>
    %20 = arith.cmpi slt, %18, %19 : vector<1x128xi32>
    %21 = math.tanh %17 : vector<8x128xf32>
    %22 = vector.shape_cast %20 : vector<1x128xi1> to vector<1x128xi1>
    %23 = vector.broadcast %22 : vector<1x128xi1> to vector<8x128xi1>
    %24 = arith.select %23, %21, %17 : vector<8x128xi1>, vector<8x128xf32>
    %c0_13 = arith.constant 0 : index
    %c0_14 = arith.constant 0 : index
    %25 = vector.load %arg6[%c0_13, %c0_14] : memref<8x128xf32, #tpu.memory_space<vmem>>, vector<8x128xf32>
    tpu.vector_store %arg6[%c0_13, %c0_14], %24 {strides = array<i32>} : memref<8x128xf32, #tpu.memory_space<vmem>>, vector<8x128xf32>,
    return
  }
  func.func @transform_0(%arg0: i32) -> (i32, i32) {
    %c0_i32 = arith.constant 0 : i32
    %c0_i32_0 = arith.constant 0 : i32
    return %arg0, %c0_i32 : i32, i32
  }
  func.func @transform_1(%arg0: i32) -> (i32, i32) {
    %c0_i32 = arith.constant 0 : i32
    %c0_i32_0 = arith.constant 0 : i32
    %c0_i32_1 = arith.constant 0 : i32
    return %c0_i32, %c0_i32_0 : i32, i32
  }
  func.func @transform_2(%arg0: i32) -> (i32, i32) {
    %c0_i32 = arith.constant 0 : i32
    %c0_i32_0 = arith.constant 0 : i32
    %c0_i32_1 = arith.constant 0 : i32
    return %c0_i32, %c0_i32_0 : i32, i32
  }
  func.func @transform_3(%arg0: i32) -> (i32, i32) {
    %c0_i32 = arith.constant 0 : i32
    %c0_i32_0 = arith.constant 0 : i32
    %c0_i32_1 = arith.constant 0 : i32
    return %c0_i32, %c0_i32_0 : i32, i32
  }
  func.func @transform_4(%arg0: i32) -> (i32, i32) {
    %c0_i32 = arith.constant 0 : i32
    %c0_i32_0 = arith.constant 0 : i32
    %c0_i32_1 = arith.constant 0 : i32
    return %c0_i32, %c0_i32_0 : i32, i32
  }
  func.func @transform_5(%arg0: i32) -> (i32, i32) {
    %c0_i32 = arith.constant 0 : i32
    %c0_i32_0 = arith.constant 0 : i32
    return %arg0, %c0_i32 : i32, i32
  }
}

</mosaic_0001>

<llo_original>
// kernel: tpu_custom_call.1
$region0: #{tpu_custom_call.1}
  #allocation0 [shape = 'u32[]', space=smem, size = 0x4, offset = 0x4, fixed_abs, tag = 'smem constant byte address 0x4 - core index']
  #allocation1 [shape = 'u32[144,128]{1,0:T(1,128)}', space=vmem, size = 0x12000, scoped, tag = 'internal scratch']
  %s0 = inlined_call_operand.hbm [shape: f32[8,16], index: 0, kind: input, shape index: {}]
  %s1 = inlined_call_operand.hbm [shape: f32[16,128], index: 1, kind: input, shape index: {}]
  %s2 = inlined_call_operand.hbm [shape: f32[128,128], index: 2, kind: input, shape index: {}]
  %s3 = inlined_call_operand.hbm [shape: f32[128,128], index: 3, kind: input, shape index: {}]
  %s4 = inlined_call_operand.vmem [shape: f32[3,128], index: 4, kind: input, shape index: {}]
  %s5 = inlined_call_operand.hbm [shape: f32[8,128], index: 5, kind: output, shape index: {}]
  %s6 = sld [smem:[#allocation0]]
  $region46: #{tpu_custom_call.1} parent=0
    _
  %s8 = ssub.s32 1, %s6
  %s9 = scalar_select 0, %s8, %s6
  $region1: #{tpu_custom_call.1} parent=0
    #allocation2 [shape = 'u8[4096]{0}', space=vmem, size = 0x1000, scoped, tag = 'input window, operand 0, single buffered']
    #allocation3 [shape = 's32[1]{0}', space=sflag, size = 0x4, scoped, tag = 'scoped memory for tpu_custom_call.1']
    #allocation4 [shape = 's32[1]{0}', space=sflag, size = 0x4, scoped, tag = 'scoped memory for tpu_custom_call.1']
    #allocation5 [shape = 'u8[8192]{0}', space=vmem, size = 0x2000, scoped, tag = 'input window, operand 1, single buffered']
    #allocation6 [shape = 's32[1]{0}', space=sflag, size = 0x4, scoped, tag = 'scoped memory for tpu_custom_call.1']
    #allocation7 [shape = 'u8[65536]{0}', space=vmem, size = 0x10000, scoped, tag = 'input window, operand 2, single buffered']
    #allocation8 [shape = 'u8[65536]{0}', space=vmem, size = 0x10000, scoped, tag = 'input window, operand 3, single buffered']
    #allocation9 [shape = 's32[1]{0}', space=sflag, size = 0x4, scoped, tag = 'scoped memory for tpu_custom_call.1']
    #allocation10 [shape = 'u8[4096]{0}', space=vmem, size = 0x1000, scoped, tag = 'output window, operand 0, single buffered']
    %10 = vsyncpa [#allocation3], 0
    %11 = vsyncpa [#allocation6], 0
    %12 = vsyncpa [#allocation9], 0
    %13 = vsyncpa [#allocation4], 0
    // Predicated region
    $region2: #{tpu_custom_call.1} parent=1 // pred_check
      _
    $region3: #{tpu_custom_call.1} parent=1 // pred_check_branch
      %15 = sbr.rel (0) target = $region5
    $region4: #{tpu_custom_call.1} parent=1 // pred_region
      %s17 = ssub.s32 128, 128
      %18 = vsyncadd [#allocation3], %s17
      %s20 = sshll.u32 [#allocation2], 4
      %s21 = int_to_ptr.vmem [resolvable:$true] %s20
      %23 = dma.hbm_to_vmem [thread:$0]  %s0, 128, %s21, [#allocation3]
    $region5: #{tpu_custom_call.1} parent=1 // pred_fallthru
      _
    // Predicated region
    $region6: #{tpu_custom_call.1} parent=1 // pred_check
      _
    $region7: #{tpu_custom_call.1} parent=1 // pred_check_branch
      %25 = sbr.rel (0) target = $region9
    $region8: #{tpu_custom_call.1} parent=1 // pred_region
      %s27 = ssub.s32 256, 256
      %28 = vsyncadd [#allocation6], %s27
      %s29 = sshll.u32 [#allocation5], 4
      %s30 = int_to_ptr.vmem [resolvable:$true] %s29
      %35 = dma.hbm_to_vmem [thread:$0]  %s1, 256, %s30, [#allocation6], 128, 128, 8
    $region9: #{tpu_custom_call.1} parent=1 // pred_fallthru
      _
    // Predicated region
    $region10: #{tpu_custom_call.1} parent=1 // pred_check
      _
    $region11: #{tpu_custom_call.1} parent=1 // pred_check_branch
      %37 = sbr.rel (0) target = $region13
    $region12: #{tpu_custom_call.1} parent=1 // pred_region
      %s39 = ssub.s32 2048, 2048
      %40 = vsyncadd [#allocation6], %s39
      %s41 = sshll.u32 [#allocation7], 4
      %s42 = int_to_ptr.vmem [resolvable:$true] %s41
      %47 = dma.hbm_to_vmem [thread:$0]  %s2, 2048, %s42, [#allocation6], 128, 128, 8
    $region13: #{tpu_custom_call.1} parent=1 // pred_fallthru
      _
    // Predicated region
    $region14: #{tpu_custom_call.1} parent=1 // pred_check
      _
    $region15: #{tpu_custom_call.1} parent=1 // pred_check_branch
      %49 = sbr.rel (0) target = $region17
    $region16: #{tpu_custom_call.1} parent=1 // pred_region
      %s51 = ssub.s32 2048, 2048
      %52 = vsyncadd [#allocation9], %s51
      %s53 = sshll.u32 [#allocation8], 4
      %s54 = int_to_ptr.vmem [resolvable:$true] %s53
      %59 = dma.hbm_to_vmem [thread:$0]  %s3, 2048, %s54, [#allocation9], 128, 128, 8
    $region17: #{tpu_custom_call.1} parent=1 // pred_fallthru
      _
    // Predicated region
    $region18: #{tpu_custom_call.1} parent=1 // pred_check
      _
    $region19: #{tpu_custom_call.1} parent=1 // pred_check_branch
      %61 = sbr.rel (0) target = $region21
    $region20: #{tpu_custom_call.1} parent=1 // pred_region
      _
    $region21: #{tpu_custom_call.1} parent=1 // pred_fallthru
      _
    // Predicated region
    $region22: #{tpu_custom_call.1} parent=1 // pred_check
      _
    $region23: #{tpu_custom_call.1} parent=1 // pred_check_branch
      %63 = sbr.rel (0) target = $region25
    $region24: #{tpu_custom_call.1} parent=1 // pred_region
      %64 = dma.done [#allocation3], 128
    $region25: #{tpu_custom_call.1} parent=1 // pred_fallthru
      _
    // Predicated region
    $region26: #{tpu_custom_call.1} parent=1 // pred_check
      _
    $region27: #{tpu_custom_call.1} parent=1 // pred_check_branch
      %66 = sbr.rel (0) target = $region29
    $region28: #{tpu_custom_call.1} parent=1 // pred_region
      %67 = dma.done [#allocation6], 256
    $region29: #{tpu_custom_call.1} parent=1 // pred_fallthru
      _
    // Predicated region
    $region30: #{tpu_custom_call.1} parent=1 // pred_check
      _
    $region31: #{tpu_custom_call.1} parent=1 // pred_check_branch
      %69 = sbr.rel (0) target = $region33
    $region32: #{tpu_custom_call.1} parent=1 // pred_region
      %70 = dma.done [#allocation6], 2048
    $region33: #{tpu_custom_call.1} parent=1 // pred_fallthru
      _
    // Predicated region
    $region34: #{tpu_custom_call.1} parent=1 // pred_check
      _
    $region35: #{tpu_custom_call.1} parent=1 // pred_check_branch
      %72 = sbr.rel (0) target = $region37
    $region36: #{tpu_custom_call.1} parent=1 // pred_region
      %73 = dma.done [#allocation9], 2048
    $region37: #{tpu_custom_call.1} parent=1 // pred_fallthru
      _
    %v74 = vld [vmem:[#allocation2] sm:$0xff]
    %v75 = vld [vmem:[#allocation5] sm:$0xff]
    %v76 = vld [vmem:[#allocation5 + $0x8] sm:$0xff]
    %v77 = vld [vmem:[%s4] sm:$0x1]
    %v78 = vlaneseq
    %v79 = vshrl.u32 %v78, 7
    %v80 = vsub.s32 0, %v79
    %v81 = vrot.slane %v77, %v80
    %vm82 = vcmask 130048
    %v84 = vsel %vm82, %v74, 0
    %86 = vmatprep.subr.mxu0 0.0
    %87 = vmatpush1.msra.mxu0 %v75
    %88 = vmatprep.subr.mxu0 0.0
    %89 = vmatpush1.msra.mxu0 %v76
    %90 = vmatprep.subr.mxu0 0.0
    %91 = vmatpush1.msra.mxu0 0.0
    %92 = vmatprep.subr.mxu0 0.0
    %93 = vmatpush1.msra.mxu0 0.0
    %94 = vmatprep.subr.mxu0 0.0
    %95 = vmatpush1.msra.mxu0 0.0
    %96 = vmatprep.subr.mxu0 0.0
    %97 = vmatpush1.msra.mxu0 0.0
    %98 = vmatprep.subr.mxu0 0.0
    %99 = vmatpush1.msra.mxu0 0.0
    %100 = vmatprep.subr.mxu0 0.0
    %101 = vmatpush1.msra.mxu0 0.0
    %102 = vmatprep.subr.mxu0 0.0
    %103 = vmatpush1.msra.mxu0 0.0
    %104 = vmatprep.subr.mxu0 0.0
    %105 = vmatpush1.msra.mxu0 0.0
    %106 = vmatprep.subr.mxu0 0.0
    %107 = vmatpush1.msra.mxu0 0.0
    %108 = vmatprep.subr.mxu0 0.0
    %109 = vmatpush1.msra.mxu0 0.0
    %110 = vmatprep.subr.mxu0 0.0
    %111 = vmatpush1.msra.mxu0 0.0
    %112 = vmatprep.subr.mxu0 0.0
    %113 = vmatpush1.msra.mxu0 0.0
    %114 = vmatprep.subr.mxu0 0.0
    %115 = vmatpush1.msra.mxu0 0.0
    %116 = vmatprep.subr.mxu0 0.0
    %117 = vmatpush1.msra.mxu0 0.0
    %118 = vmatprep.subr.mxu0 0.0
    %119 = vmatpush1.msra.mxu0 0.0
    %120 = vmatprep.subr.mxu0 0.0
    %121 = vmatpush1.msra.mxu0 0.0
    %122 = vmatprep.subr.mxu0 0.0
    %123 = vmatpush1.msra.mxu0 0.0
    %124 = vmatprep.subr.mxu0 0.0
    %125 = vmatpush1.msra.mxu0 0.0
    %126 = vmatprep.subr.mxu0 0.0
    %127 = vmatpush1.msra.mxu0 0.0
    %128 = vmatprep.subr.mxu0 0.0
    %129 = vmatpush1.msra.mxu0 0.0
    %130 = vmatprep.subr.mxu0 0.0
    %131 = vmatpush1.msra.mxu0 0.0
    %132 = vmatprep.subr.mxu0 0.0
    %133 = vmatpush1.msra.mxu0 0.0
    %134 = vmatprep.subr.mxu0 0.0
    %135 = vmatpush1.msra.mxu0 0.0
    %136 = vmatprep.subr.mxu0 0.0
    %137 = vmatpush1.msra.mxu0 0.0
    %138 = vmatprep.subr.mxu0 0.0
    %139 = vmatpush1.msra.mxu0 0.0
    %140 = vmatprep.subr.mxu0 0.0
    %141 = vmatpush1.msra.mxu0 0.0
    %142 = vmatprep.subr.mxu0 0.0
    %143 = vmatpush1.msra.mxu0 0.0
    %144 = vmatprep.subr.mxu0 0.0
    %145 = vmatpush1.msra.mxu0 0.0
    %146 = vmatprep.subr.mxu0 0.0
    %147 = vmatpush1.msra.mxu0 0.0
    %148 = vmatprep.subr.mxu0 0.0
    %149 = vmatpush1.msra.mxu0 0.0
    %150 = vmatprep.mubr.f32.mxu0 0.0
    %151 = vmatmul.mubr.f32.gmra.mrb[0].mxu0 %v84
    %v152 = vpop.f32.mrb[0].mxu0
    %v153 = vadd.f32 %v81, %v152
    %v154 = vpop.f32.mrb[0].mxu0
    %155 = vdwg.mxu0
    %v156 = vtanh.pop %v153
    %v157 = vld [vmem:[#allocation7] sm:$0xff]
    %v158 = vld [vmem:[#allocation7 + $0x8] sm:$0xff]
    %v159 = vld [vmem:[#allocation7 + $0x10] sm:$0xff]
    %v160 = vld [vmem:[#allocation7 + $0x18] sm:$0xff]
    %v161 = vld [vmem:[#allocation7 + $0x20] sm:$0xff]
    %v162 = vld [vmem:[#allocation7 + $0x28] sm:$0xff]
    %v163 = vld [vmem:[#allocation7 + $0x30] sm:$0xff]
    %v164 = vld [vmem:[#allocation7 + $0x38] sm:$0xff]
    %v165 = vld [vmem:[#allocation7 + $0x40] sm:$0xff]
    %v166 = vld [vmem:[#allocation7 + $0x48] sm:$0xff]
    %v167 = vld [vmem:[#allocation7 + $0x50] sm:$0xff]
    %v168 = vld [vmem:[#allocation7 + $0x58] sm:$0xff]
    %v169 = vld [vmem:[#allocation7 + $0x60] sm:$0xff]
    %v170 = vld [vmem:[#allocation7 + $0x68] sm:$0xff]
    %v171 = vld [vmem:[#allocation7 + $0x70] sm:$0xff]
    %v172 = vld [vmem:[#allocation7 + $0x78] sm:$0xff]
    %v173 = vld [vmem:[%s4 + $0x1] sm:$0x1]
    %v174 = vlaneseq
    %v175 = vshrl.u32 %v174, 7
    %v176 = vsub.s32 0, %v175
    %v177 = vrot.slane %v173, %v176
    %178 = vmatprep.subr.mxu0 0.0
    %179 = vmatpush1.msra.mxu0 %v157
    %180 = vmatprep.subr.mxu0 0.0
    %181 = vmatpush1.msra.mxu0 %v158
    %182 = vmatprep.subr.mxu0 0.0
    %183 = vmatpush1.msra.mxu0 %v159
    %184 = vmatprep.subr.mxu0 0.0
    %185 = vmatpush1.msra.mxu0 %v160
    %186 = vmatprep.subr.mxu0 0.0
    %187 = vmatpush1.msra.mxu0 %v161
    %188 = vmatprep.subr.mxu0 0.0
    %189 = vmatpush1.msra.mxu0 %v162
    %190 = vmatprep.subr.mxu0 0.0
    %191 = vmatpush1.msra.mxu0 %v163
    %192 = vmatprep.subr.mxu0 0.0
    %193 = vmatpush1.msra.mxu0 %v164
    %194 = vmatprep.subr.mxu0 0.0
    %195 = vmatpush1.msra.mxu0 %v165
    %196 = vmatprep.subr.mxu0 0.0
    %197 = vmatpush1.msra.mxu0 %v166
    %198 = vmatprep.subr.mxu0 0.0
    %199 = vmatpush1.msra.mxu0 %v167
    %200 = vmatprep.subr.mxu0 0.0
    %201 = vmatpush1.msra.mxu0 %v168
    %202 = vmatprep.subr.mxu0 0.0
    %203 = vmatpush1.msra.mxu0 %v169
    %204 = vmatprep.subr.mxu0 0.0
    %205 = vmatpush1.msra.mxu0 %v170
    %206 = vmatprep.subr.mxu0 0.0
    %207 = vmatpush1.msra.mxu0 %v171
    %208 = vmatprep.subr.mxu0 0.0
    %209 = vmatpush1.msra.mxu0 %v172
    %210 = vmatprep.subr.mxu0 0.0
    %211 = vmatpush1.msra.mxu0 0.0
    %212 = vmatprep.subr.mxu0 0.0
    %213 = vmatpush1.msra.mxu0 0.0
    %214 = vmatprep.subr.mxu0 0.0
    %215 = vmatpush1.msra.mxu0 0.0
    %216 = vmatprep.subr.mxu0 0.0
    %217 = vmatpush1.msra.mxu0 0.0
    %218 = vmatprep.subr.mxu0 0.0
    %219 = vmatpush1.msra.mxu0 0.0
    %220 = vmatprep.subr.mxu0 0.0
    %221 = vmatpush1.msra.mxu0 0.0
    %222 = vmatprep.subr.mxu0 0.0
    %223 = vmatpush1.msra.mxu0 0.0
    %224 = vmatprep.subr.mxu0 0.0
    %225 = vmatpush1.msra.mxu0 0.0
    %226 = vmatprep.subr.mxu0 0.0
    %227 = vmatpush1.msra.mxu0 0.0
    %228 = vmatprep.subr.mxu0 0.0
    %229 = vmatpush1.msra.mxu0 0.0
    %230 = vmatprep.subr.mxu0 0.0
    %231 = vmatpush1.msra.mxu0 0.0
    %232 = vmatprep.subr.mxu0 0.0
    %233 = vmatpush1.msra.mxu0 0.0
    %234 = vmatprep.subr.mxu0 0.0
    %235 = vmatpush1.msra.mxu0 0.0
    %236 = vmatprep.subr.mxu0 0.0
    %237 = vmatpush1.msra.mxu0 0.0
    %238 = vmatprep.subr.mxu0 0.0
    %239 = vmatpush1.msra.mxu0 0.0
    %240 = vmatprep.subr.mxu0 0.0
    %241 = vmatpush1.msra.mxu0 0.0
    %242 = vmatprep.mubr.f32.mxu0 0.0
    %243 = vmatmul.mubr.f32.gmra.mrb[0].mxu0 %v156
    %v244 = vpop.f32.mrb[0].mxu0
    %v245 = vadd.f32 %v177, %v244
    %v246 = vpop.f32.mrb[0].mxu0
    %247 = vdwg.mxu0
    %v248 = vtanh.pop %v245
    %v249 = vld [vmem:[#allocation8] sm:$0xff]
    %v250 = vld [vmem:[#allocation8 + $0x8] sm:$0xff]
    %v251 = vld [vmem:[#allocation8 + $0x10] sm:$0xff]
    %v252 = vld [vmem:[#allocation8 + $0x18] sm:$0xff]
    %v253 = vld [vmem:[#allocation8 + $0x20] sm:$0xff]
    %v254 = vld [vmem:[#allocation8 + $0x28] sm:$0xff]
    %v255 = vld [vmem:[#allocation8 + $0x30] sm:$0xff]
    %v256 = vld [vmem:[#allocation8 + $0x38] sm:$0xff]
    %v257 = vld [vmem:[#allocation8 + $0x40] sm:$0xff]
    %v258 = vld [vmem:[#allocation8 + $0x48] sm:$0xff]
    %v259 = vld [vmem:[#allocation8 + $0x50] sm:$0xff]
    %v260 = vld [vmem:[#allocation8 + $0x58] sm:$0xff]
    %v261 = vld [vmem:[#allocation8 + $0x60] sm:$0xff]
    %v262 = vld [vmem:[#allocation8 + $0x68] sm:$0xff]
    %v263 = vld [vmem:[#allocation8 + $0x70] sm:$0xff]
    %v264 = vld [vmem:[#allocation8 + $0x78] sm:$0xff]
    %v265 = vld [vmem:[%s4 + $0x2] sm:$0x1]
    %v266 = vlaneseq
    %v267 = vshrl.u32 %v266, 7
    %v268 = vsub.s32 0, %v267
    %v269 = vrot.slane %v265, %v268
    %270 = vmatprep.subr.mxu0 0.0
    %271 = vmatpush1.msra.mxu0 %v249
    %272 = vmatprep.subr.mxu0 0.0
    %273 = vmatpush1.msra.mxu0 %v250
    %274 = vmatprep.subr.mxu0 0.0
    %275 = vmatpush1.msra.mxu0 %v251
    %276 = vmatprep.subr.mxu0 0.0
    %277 = vmatpush1.msra.mxu0 %v252
    %278 = vmatprep.subr.mxu0 0.0
    %279 = vmatpush1.msra.mxu0 %v253
    %280 = vmatprep.subr.mxu0 0.0
    %281 = vmatpush1.msra.mxu0 %v254
    %282 = vmatprep.subr.mxu0 0.0
    %283 = vmatpush1.msra.mxu0 %v255
    %284 = vmatprep.subr.mxu0 0.0
    %285 = vmatpush1.msra.mxu0 %v256
    %286 = vmatprep.subr.mxu0 0.0
    %287 = vmatpush1.msra.mxu0 %v257
    %288 = vmatprep.subr.mxu0 0.0
    %289 = vmatpush1.msra.mxu0 %v258
    %290 = vmatprep.subr.mxu0 0.0
    %291 = vmatpush1.msra.mxu0 %v259
    %292 = vmatprep.subr.mxu0 0.0
    %293 = vmatpush1.msra.mxu0 %v260
    %294 = vmatprep.subr.mxu0 0.0
    %295 = vmatpush1.msra.mxu0 %v261
    %296 = vmatprep.subr.mxu0 0.0
    %297 = vmatpush1.msra.mxu0 %v262
    %298 = vmatprep.subr.mxu0 0.0
    %299 = vmatpush1.msra.mxu0 %v263
    %300 = vmatprep.subr.mxu0 0.0
    %301 = vmatpush1.msra.mxu0 %v264
    %302 = vmatprep.subr.mxu0 0.0
    %303 = vmatpush1.msra.mxu0 0.0
    %304 = vmatprep.subr.mxu0 0.0
    %305 = vmatpush1.msra.mxu0 0.0
    %306 = vmatprep.subr.mxu0 0.0
    %307 = vmatpush1.msra.mxu0 0.0
    %308 = vmatprep.subr.mxu0 0.0
    %309 = vmatpush1.msra.mxu0 0.0
    %310 = vmatprep.subr.mxu0 0.0
    %311 = vmatpush1.msra.mxu0 0.0
    %312 = vmatprep.subr.mxu0 0.0
    %313 = vmatpush1.msra.mxu0 0.0
    %314 = vmatprep.subr.mxu0 0.0
    %315 = vmatpush1.msra.mxu0 0.0
    %316 = vmatprep.subr.mxu0 0.0
    %317 = vmatpush1.msra.mxu0 0.0
    %318 = vmatprep.subr.mxu0 0.0
    %319 = vmatpush1.msra.mxu0 0.0
    %320 = vmatprep.subr.mxu0 0.0
    %321 = vmatpush1.msra.mxu0 0.0
    %322 = vmatprep.subr.mxu0 0.0
    %323 = vmatpush1.msra.mxu0 0.0
    %324 = vmatprep.subr.mxu0 0.0
    %325 = vmatpush1.msra.mxu0 0.0
    %326 = vmatprep.subr.mxu0 0.0
    %327 = vmatpush1.msra.mxu0 0.0
    %328 = vmatprep.subr.mxu0 0.0
    %329 = vmatpush1.msra.mxu0 0.0
    %330 = vmatprep.subr.mxu0 0.0
    %331 = vmatpush1.msra.mxu0 0.0
    %332 = vmatprep.subr.mxu0 0.0
    %333 = vmatpush1.msra.mxu0 0.0
    %334 = vmatprep.mubr.f32.mxu0 0.0
    %335 = vmatmul.mubr.f32.gmra.mrb[0].mxu0 %v248
    %v336 = vpop.f32.mrb[0].mxu0
    %v337 = vadd.f32 %v269, %v336
    %v338 = vpop.f32.mrb[0].mxu0
    %339 = vdwg.mxu0
    %v340 = vlaneseq
    %v341 = vand.u32 %v340, 127
    %vm342 = vcmp.lt.s32.totalorder %v341, 4
    %v343 = vtanh.pop %v337
    %v344 = vsel %vm342, 1, 0
    %vm345 = vcmp.eq.s32.totalorder %v344, 1
    %v346 = vsel %vm345, %v343, %v337
    %347 = vst [vmem:[#allocation10] sm:$0xff] %v346
    // Predicated region
    $region38: #{tpu_custom_call.1} parent=1 // pred_check
      _
    $region39: #{tpu_custom_call.1} parent=1 // pred_check_branch
      %349 = sbr.rel (0) target = $region41
    $region40: #{tpu_custom_call.1} parent=1 // pred_region
      %s351 = ssub.s32 128, 128
      %352 = vsyncadd [#allocation4], %s351
      %s354 = sshll.u32 [#allocation10], 4
      %s355 = int_to_ptr.vmem [resolvable:$true] %s354
      %357 = dma.vmem_to_hbm [thread:$0]  %s355, 128, %s5, [#allocation4]
    $region41: #{tpu_custom_call.1} parent=1 // pred_fallthru
      _
    // Predicated region
    $region42: #{tpu_custom_call.1} parent=1 // pred_check
      _
    $region43: #{tpu_custom_call.1} parent=1 // pred_check_branch
      %359 = sbr.rel (0) target = $region45
    $region44: #{tpu_custom_call.1} parent=1 // pred_region
      %360 = dma.done [#allocation4], 128
    $region45: #{tpu_custom_call.1} parent=1 // pred_fallthru
      _
    %361 = vsyncpa [#allocation3], 1
    %362 = vsyncpa [#allocation6], 1
    %363 = vsyncpa [#allocation9], 1
    %364 = vsyncpa [#allocation4], 1

</llo_original>
